<compile_context>
chip_gen: v7x
topology: tpu7x:2x2x1
jax: 0.10.0
libtpu: 0.0.40
codegen_flags: <defaults>
</compile_context>

<pallas_src>
import math
import numpy as np
import jax
import jax.numpy as jnp
from jax.experimental import pallas as pl
from jax.experimental.pallas import tpu as pltpu


def _mlp_readout2_kernel(x_ref, w0_ref, b0_ref, w1_ref, b1_ref, w2_ref, b2_ref, o_ref):
    """Three fused Linear layers (+ ReLU on the first two), fully VMEM-resident."""
    cdt = w0_ref.dtype                       # MXU compute dtype (bf16 by default)
    y = x_ref[...]
    if y.dtype != cdt:                       # conditional cast; no-op when dtypes match
        y = y.astype(cdt)

    # layer 0: Linear + ReLU  (f32 accumulation; bias-add / ReLU in f32)
    y = jnp.dot(y, w0_ref[...], preferred_element_type=jnp.float32) + b0_ref[...]
    y = jnp.maximum(y, 0.0).astype(cdt)

    # layer 1: Linear + ReLU
    y = jnp.dot(y, w1_ref[...], preferred_element_type=jnp.float32) + b1_ref[...]
    y = jnp.maximum(y, 0.0).astype(cdt)

    # final layer: Linear (no activation)
    y = jnp.dot(y, w2_ref[...], preferred_element_type=jnp.float32) + b2_ref[...]
    o_ref[...] = y.astype(o_ref.dtype)


def _round_up(x, m):
    return -(-x // m) * m


def _vmem_capacity_bytes():
    try:
        return int(pltpu.get_tpu_info().vmem_capacity_bytes)
    except Exception:
        return 64 << 20  # safe on every generation (v7x has 64 MiB / TC)


def _num_tensorcores():
    """2 TensorCores/chip only on v7x; v5e/v6e have 1 (grid = serial loop there)."""
    try:
        kind = jax.devices()[0].device_kind.lower()
        return 2 if "v7" in kind else 1
    except Exception:
        return 1


def _pick_bm(batch, d_in, x_itemsize, per_row_bytes, vmem_cap, w_bytes, num_tc):
    """Batch tile: ~2 MiB of x per step (few, fat steps; ~0.35 us per-step overhead),
    256-row aligned, capped by the VMEM budget.  On v7x only, split into >=2 steps
    so 'parallel' can shard across both TCs -- never below a ~1 MiB per-TC x tile."""
    b_pad = _round_up(batch, 8)
    target = _round_up(max(256, (2 << 20) // max(1, d_in * x_itemsize)), 256)
    budget = int(0.7 * vmem_cap) - w_bytes - (8 << 20)       # headroom for internal scratch
    bm_cap = max(8, (budget // max(1, per_row_bytes)) // 8 * 8)
    bm = max(8, min(target, bm_cap, b_pad))
    steps = -(-b_pad // bm)
    if num_tc >= 2 and steps < 2:
        half = _round_up(-(-b_pad // 2), 8)
        if half * d_in * x_itemsize >= (1 << 20):             # keep per-TC tiles fat
            bm = min(bm, half)
    return max(8, bm)


def mlp_readout2(x, params, *, compute_dtype=jnp.bfloat16, bm=None, x_buffers=2):
    """x: [B, input_dim] (any float dtype; bf16 input avoids the in-kernel cast).
    params: list of 3 (W(out,in), b(out,)) PyTorch-style arrays."""
    B, D = x.shape
    (w0, b0), (w1, b1), (w2, b2) = params

    # Wrapper-side weight prep: transpose to (in, out); weights in the MXU compute
    # dtype, biases kept in f32 (bias-add / ReLU happen in f32 inside the kernel).
    w0t = w0.T.astype(compute_dtype)
    w1t = w1.T.astype(compute_dtype)
    w2t = w2.T.astype(compute_dtype)
    b0r = b0[None, :].astype(jnp.float32)
    b1r = b1[None, :].astype(jnp.float32)
    b2r = b2[None, :].astype(jnp.float32)

    h0, h1, d_out = w0t.shape[1], w1t.shape[1], w2t.shape[1]

    w_bytes = sum(int(a.size) * a.dtype.itemsize for a in (w0t, b0r, w1t, b1r, w2t, b2r))
    vmem_cap = _vmem_capacity_bytes()
    num_tc = _num_tensorcores()

    # Per-row VMEM footprint of one grid step: pipelined x / out tiles plus the fused
    # f32 intermediates and compute-dtype copies Mosaic materializes (+50% margin).
    x_is = jnp.dtype(x.dtype).itemsize
    c_is = jnp.dtype(compute_dtype).itemsize
    per_row = (x_buffers * D * x_is            # pipelined x tile
               + 2 * d_out * 4                 # pipelined f32 output tile
               + (h0 + h1 + d_out) * 4         # fused f32 intermediates
               + (D + h0 + h1) * c_is)         # compute-dtype copies
    per_row = int(per_row * 1.5) + 64

    if bm is None:
        bm = _pick_bm(B, D, x_is, per_row, vmem_cap, w_bytes, num_tc)
    bm = max(8, min(_round_up(bm, 8), _round_up(B, 8)))
    grid = (pl.cdiv(B, bm),)

    # Grid-invariant operands: constant index map + single-buffered (half the VMEM,
    # fetched only once since the block index never changes).
    def _resident(arr):
        return pl.BlockSpec(arr.shape, lambda i: (0, 0), pipeline_mode=pl.Buffered(1))

    # x spec: default double-buffered; allow Buffered(3) on v5e if DMA is exposed.
    x_kwargs = {} if x_buffers == 2 else {"pipeline_mode": pl.Buffered(x_buffers)}
    x_spec = pl.BlockSpec((bm, D), lambda i: (i, 0), **x_kwargs)

    vmem_limit = int(min(max(w_bytes + bm * per_row + (8 << 20), 32 << 20),
                         0.9 * vmem_cap))

    out = pl.pallas_call(
        _mlp_readout2_kernel,
        out_shape=jax.ShapeDtypeStruct((B, d_out), jnp.float32),
        grid_spec=pltpu.PrefetchScalarGridSpec(
            num_scalar_prefetch=0,
            grid=grid,
            in_specs=[
                x_spec,
                _resident(w0t), _resident(b0r),
                _resident(w1t), _resident(b1r),
                _resident(w2t), _resident(b2r),
            ],
            # Unpadded output block: last dim == full array dim is legal; avoids
            # 32x f32 writeback inflation and the wrapper de-pad slice pass.
            out_specs=pl.BlockSpec((bm, d_out), lambda i: (i, 0)),
        ),
        compiler_params=pltpu.CompilerParams(
            dimension_semantics=("parallel",),
            vmem_limit_bytes=vmem_limit,
        ),
    )(x, w0t, b0r, w1t, b1r, w2t, b2r)

    return out


def init_mlp_readout2_params(key, input_dim, output_dim, L=2):
    """Deterministic PyTorch-nn.Linear-style uniform init: U(-1/sqrt(fan_in), +)."""
    dims_in = [input_dim // (2 ** l) for l in range(L)] + [input_dim // (2 ** L)]
    dims_out = [input_dim // (2 ** (l + 1)) for l in range(L)] + [output_dim]
    params = []
    for din, dout in zip(dims_in, dims_out):
        key, kw, kb = jax.random.split(key, 3)
        bound = 1.0 / math.sqrt(din)
        W = jax.random.uniform(kw, (dout, din), jnp.float32, -bound, bound)
        b = jax.random.uniform(kb, (dout,), jnp.float32, -bound, bound)
        params.append((W, b))
    return params


def _reference(x, params, compute_dtype=jnp.float32):
    """Pure-JAX reference; emulates the same compute-dtype-in / f32-accumulate numerics."""
    y = x
    n = len(params)
    for l, (W, b) in enumerate(params):
        y = jnp.dot(y.astype(compute_dtype), W.T.astype(compute_dtype),
                    preferred_element_type=jnp.float32) + b.astype(jnp.float32)
        if l < n - 1:
            y = jnp.maximum(y, 0.0)
    return y


if __name__ == "__main__":
    key = jax.random.PRNGKey(0)
    kx, kp = jax.random.split(key)

    batch, input_dim, output_dim, L = 8, 32, 4, 2
    x = jax.random.normal(kx, (batch, input_dim), jnp.float32)
    params = init_mlp_readout2_params(kp, input_dim, output_dim, L=L)

    # 1) bf16-MXU path (default) vs bf16-compute reference.
    out_bf16 = jax.block_until_ready(mlp_readout2(x, params))
    ref_bf16 = _reference(x, params, compute_dtype=jnp.bfloat16)
    np.testing.assert_allclose(np.asarray(out_bf16), np.asarray(ref_bf16),
                               rtol=1e-2, atol=1e-2)

    # 2) f32 path vs f32 reference (guards against drift from the original f32 module).
    out_f32 = jax.block_until_ready(mlp_readout2(x, params, compute_dtype=jnp.float32))
    ref_f32 = _reference(x, params, compute_dtype=jnp.float32)
    np.testing.assert_allclose(np.asarray(out_f32), np.asarray(ref_f32),
                               rtol=1e-5, atol=1e-5)

    # 3) Partial last batch tile (B % bm != 0) exercises the row-independent padding path.
    x2 = jax.random.normal(kx, (20, input_dim), jnp.float32)
    out_p = jax.block_until_ready(mlp_readout2(x2, params, compute_dtype=jnp.float32, bm=8))
    ref_p = _reference(x2, params, compute_dtype=jnp.float32)
    np.testing.assert_allclose(np.asarray(out_p), np.asarray(ref_p),
                               rtol=1e-5, atol=1e-5)

    print("KERNEL_OK")
</pallas_src>

<mosaic_0001>
module attributes {stable_mosaic.version = 11 : i64} {
  func.func @_mlp_readout2_kernel(%arg0: i32, %arg1: memref<8x32xf32, #tpu.memory_space<vmem>>, %arg2: memref<32x16xbf16, #tpu.memory_space<vmem>>, %arg3: memref<1x16xf32, #tpu.memory_space<vmem>>, %arg4: memref<16x8xbf16, #tpu.memory_space<vmem>>, %arg5: memref<1x8xf32, #tpu.memory_space<vmem>>, %arg6: memref<8x4xbf16, #tpu.memory_space<vmem>>, %arg7: memref<1x4xf32, #tpu.memory_space<vmem>>, %arg8: memref<8x4xf32, #tpu.memory_space<vmem>>) attributes {dimension_semantics = [#tpu.dimension_semantics<parallel>], iteration_bounds = array<i64: 1>, scalar_prefetch = 0 : i64, scratch_operands = 0 : i64, tpu.core_type = #tpu.core_type<tc>, window_params = [{transform_indices = @transform_0, window_bounds = array<i64: 8, 32>}, {pipeline_mode = #tpu.pipeline_mode<synchronous>, transform_indices = @transform_1, window_bounds = array<i64: 32, 16>}, {pipeline_mode = #tpu.pipeline_mode<synchronous>, transform_indices = @transform_2, window_bounds = array<i64: 1, 16>}, {pipeline_mode = #tpu.pipeline_mode<synchronous>, transform_indices = @transform_3, window_bounds = array<i64: 16, 8>}, {pipeline_mode = #tpu.pipeline_mode<synchronous>, transform_indices = @transform_4, window_bounds = array<i64: 1, 8>}, {pipeline_mode = #tpu.pipeline_mode<synchronous>, transform_indices = @transform_5, window_bounds = array<i64: 8, 4>}, {pipeline_mode = #tpu.pipeline_mode<synchronous>, transform_indices = @transform_6, window_bounds = array<i64: 1, 4>}, {transform_indices = @transform_7, window_bounds = array<i64: 8, 4>}]} {
    %c0 = arith.constant 0 : index
    %c0_0 = arith.constant 0 : index
    %0 = vector.load %arg1[%c0, %c0_0] : memref<8x32xf32, #tpu.memory_space<vmem>>, vector<8x32xf32>
    %1 = arith.truncf %0 : vector<8x32xf32> to vector<8x32xbf16>
    %c0_1 = arith.constant 0 : index
    %c0_2 = arith.constant 0 : index
    %2 = vector.load %arg2[%c0_1, %c0_2] : memref<32x16xbf16, #tpu.memory_space<vmem>>, vector<32x16xbf16>
    %cst = arith.constant dense<0.000000e+00> : vector<8x16xf32>
    %3 = tpu.matmul %1, %2, %cst {dimension_numbers = #tpu.dot_dimension_numbers<[1], [0], [0], [1], [0, 0, 1, 1], [], []>} : vector<8x32xbf16>, vector<32x16xbf16>, vector<8x16xf32> -> vector<8x16xf32>
    %c0_3 = arith.constant 0 : index
    %c0_4 = arith.constant 0 : index
    %4 = vector.load %arg3[%c0_3, %c0_4] : memref<1x16xf32, #tpu.memory_space<vmem>>, vector<1x16xf32>
    %5 = vector.broadcast %4 : vector<1x16xf32> to vector<8x16xf32>
    %6 = arith.addf %3, %5 : vector<8x16xf32>
    %cst_5 = arith.constant 0.000000e+00 : f32
    %7 = vector.broadcast %cst_5 : f32 to vector<8x16xf32>
    %8 = arith.maximumf %6, %7 : vector<8x16xf32>
    %9 = arith.truncf %8 : vector<8x16xf32> to vector<8x16xbf16>
    %c0_6 = arith.constant 0 : index
    %c0_7 = arith.constant 0 : index
    %10 = vector.load %arg4[%c0_6, %c0_7] : memref<16x8xbf16, #tpu.memory_space<vmem>>, vector<16x8xbf16>
    %cst_8 = arith.constant dense<0.000000e+00> : vector<8x8xf32>
    %11 = tpu.matmul %9, %10, %cst_8 {dimension_numbers = #tpu.dot_dimension_numbers<[1], [0], [0], [1], [0, 0, 1, 1], [], []>} : vector<8x16xbf16>, vector<16x8xbf16>, vector<8x8xf32> -> vector<8x8xf32>
    %c0_9 = arith.constant 0 : index
    %c0_10 = arith.constant 0 : index
    %12 = vector.load %arg5[%c0_9, %c0_10] : memref<1x8xf32, #tpu.memory_space<vmem>>, vector<1x8xf32>
    %13 = vector.broadcast %12 : vector<1x8xf32> to vector<8x8xf32>
    %14 = arith.addf %11, %13 : vector<8x8xf32>
    %cst_11 = arith.constant 0.000000e+00 : f32
    %15 = vector.broadcast %cst_11 : f32 to vector<8x8xf32>
    %16 = arith.maximumf %14, %15 : vector<8x8xf32>
    %17 = arith.truncf %16 : vector<8x8xf32> to vector<8x8xbf16>
    %c0_12 = arith.constant 0 : index
    %c0_13 = arith.constant 0 : index
    %18 = vector.load %arg6[%c0_12, %c0_13] : memref<8x4xbf16, #tpu.memory_space<vmem>>, vector<8x4xbf16>
    %cst_14 = arith.constant dense<0.000000e+00> : vector<8x4xf32>
    %19 = tpu.matmul %17, %18, %cst_14 {dimension_numbers = #tpu.dot_dimension_numbers<[1], [0], [0], [1], [0, 0, 1, 1], [], []>} : vector<8x8xbf16>, vector<8x4xbf16>, vector<8x4xf32> -> vector<8x4xf32>
    %c0_15 = arith.constant 0 : index
    %c0_16 = arith.constant 0 : index
    %20 = vector.load %arg7[%c0_15, %c0_16] : memref<1x4xf32, #tpu.memory_space<vmem>>, vector<1x4xf32>
    %21 = vector.broadcast %20 : vector<1x4xf32> to vector<8x4xf32>
    %22 = arith.addf %19, %21 : vector<8x4xf32>
    %c0_17 = arith.constant 0 : index
    %c0_18 = arith.constant 0 : index
    %23 = vector.load %arg8[%c0_17, %c0_18] : memref<8x4xf32, #tpu.memory_space<vmem>>, vector<8x4xf32>
    tpu.vector_store %arg8[%c0_17, %c0_18], %22 {strides = array<i32>} : memref<8x4xf32, #tpu.memory_space<vmem>>, vector<8x4xf32>,
    return
  }
  func.func @transform_0(%arg0: i32) -> (i32, i32) {
    %c0_i32 = arith.constant 0 : i32
    %c0_i32_0 = arith.constant 0 : i32
    return %arg0, %c0_i32 : i32, i32
  }
  func.func @transform_1(%arg0: i32) -> (i32, i32) {
    %c0_i32 = arith.constant 0 : i32
    %c0_i32_0 = arith.constant 0 : i32
    %c0_i32_1 = arith.constant 0 : i32
    return %c0_i32, %c0_i32_0 : i32, i32
  }
  func.func @transform_2(%arg0: i32) -> (i32, i32) {
    %c0_i32 = arith.constant 0 : i32
    %c0_i32_0 = arith.constant 0 : i32
    %c0_i32_1 = arith.constant 0 : i32
    return %c0_i32, %c0_i32_0 : i32, i32
  }
  func.func @transform_3(%arg0: i32) -> (i32, i32) {
    %c0_i32 = arith.constant 0 : i32
    %c0_i32_0 = arith.constant 0 : i32
    %c0_i32_1 = arith.constant 0 : i32
    return %c0_i32, %c0_i32_0 : i32, i32
  }
  func.func @transform_4(%arg0: i32) -> (i32, i32) {
    %c0_i32 = arith.constant 0 : i32
    %c0_i32_0 = arith.constant 0 : i32
    %c0_i32_1 = arith.constant 0 : i32
    return %c0_i32, %c0_i32_0 : i32, i32
  }
  func.func @transform_5(%arg0: i32) -> (i32, i32) {
    %c0_i32 = arith.constant 0 : i32
    %c0_i32_0 = arith.constant 0 : i32
    %c0_i32_1 = arith.constant 0 : i32
    return %c0_i32, %c0_i32_0 : i32, i32
  }
  func.func @transform_6(%arg0: i32) -> (i32, i32) {
    %c0_i32 = arith.constant 0 : i32
    %c0_i32_0 = arith.constant 0 : i32
    %c0_i32_1 = arith.constant 0 : i32
    return %c0_i32, %c0_i32_0 : i32, i32
  }
  func.func @transform_7(%arg0: i32) -> (i32, i32) {
    %c0_i32 = arith.constant 0 : i32
    %c0_i32_0 = arith.constant 0 : i32
    return %arg0, %c0_i32 : i32, i32
  }
}

</mosaic_0001>

<llo_original>
// kernel: tpu_custom_call.1
$region0: #{tpu_custom_call.1}
  #allocation0 [shape = 'u32[]', space=smem, size = 0x4, offset = 0x4, fixed_abs, tag = 'smem constant byte address 0x4 - core index']
  #allocation1 [shape = 'u32[144,128]{1,0:T(1,128)}', space=vmem, size = 0x12000, scoped, tag = 'internal scratch']
  %s0 = inlined_call_operand.vmem [shape: f32[8,32], index: 0, kind: input, shape index: {}]
  %s1 = inlined_call_operand.vmem [shape: bf16[32,16], index: 1, kind: input, shape index: {}]
  %s2 = inlined_call_operand.vmem [shape: f32[1,16], index: 2, kind: input, shape index: {}]
  %s3 = inlined_call_operand.vmem [shape: bf16[16,8], index: 3, kind: input, shape index: {}]
  %s4 = inlined_call_operand.vmem [shape: f32[1,8], index: 4, kind: input, shape index: {}]
  %s5 = inlined_call_operand.vmem [shape: bf16[8,4], index: 5, kind: input, shape index: {}]
  %s6 = inlined_call_operand.vmem [shape: f32[1,4], index: 6, kind: input, shape index: {}]
  %s7 = inlined_call_operand.vmem [shape: f32[8,4], index: 7, kind: output, shape index: {}]
  %s8 = sld [smem:[#allocation0]]
  $region38: #{tpu_custom_call.1} parent=0
    _
  %s10 = ssub.s32 1, %s8
  %s11 = scalar_select 0, %s10, %s8
  // Predicated region
  $region2: #{tpu_custom_call.1} parent=0 // pred_check
    _
  $region3: #{tpu_custom_call.1} parent=0 // pred_check_branch
    %13 = sbr.rel (0) target = $region5
  $region4: #{tpu_custom_call.1} parent=0 // pred_region
    _
  $region5: #{tpu_custom_call.1} parent=0 // pred_fallthru
    _
  // Predicated region
  $region6: #{tpu_custom_call.1} parent=0 // pred_check
    _
  $region7: #{tpu_custom_call.1} parent=0 // pred_check_branch
    %15 = sbr.rel (0) target = $region9
  $region8: #{tpu_custom_call.1} parent=0 // pred_region
    _
  $region9: #{tpu_custom_call.1} parent=0 // pred_fallthru
    _
  // Predicated region
  $region10: #{tpu_custom_call.1} parent=0 // pred_check
    _
  $region11: #{tpu_custom_call.1} parent=0 // pred_check_branch
    %17 = sbr.rel (0) target = $region13
  $region12: #{tpu_custom_call.1} parent=0 // pred_region
    _
  $region13: #{tpu_custom_call.1} parent=0 // pred_fallthru
    _
  // Predicated region
  $region14: #{tpu_custom_call.1} parent=0 // pred_check
    _
  $region15: #{tpu_custom_call.1} parent=0 // pred_check_branch
    %19 = sbr.rel (0) target = $region17
  $region16: #{tpu_custom_call.1} parent=0 // pred_region
    _
  $region17: #{tpu_custom_call.1} parent=0 // pred_fallthru
    _
  // Predicated region
  $region18: #{tpu_custom_call.1} parent=0 // pred_check
    _
  $region19: #{tpu_custom_call.1} parent=0 // pred_check_branch
    %21 = sbr.rel (0) target = $region21
  $region20: #{tpu_custom_call.1} parent=0 // pred_region
    _
  $region21: #{tpu_custom_call.1} parent=0 // pred_fallthru
    _
  // Predicated region
  $region22: #{tpu_custom_call.1} parent=0 // pred_check
    _
  $region23: #{tpu_custom_call.1} parent=0 // pred_check_branch
    %23 = sbr.rel (0) target = $region25
  $region24: #{tpu_custom_call.1} parent=0 // pred_region
    _
  $region25: #{tpu_custom_call.1} parent=0 // pred_fallthru
    _
  // Predicated region
  $region26: #{tpu_custom_call.1} parent=0 // pred_check
    _
  $region27: #{tpu_custom_call.1} parent=0 // pred_check_branch
    %25 = sbr.rel (0) target = $region29
  $region28: #{tpu_custom_call.1} parent=0 // pred_region
    _
  $region29: #{tpu_custom_call.1} parent=0 // pred_fallthru
    _
  %v27 = vld [vmem:[%s0] sm:$0xff]
  %v28 = vpack.c.bf16 %v27, %v27
  %v29 = vld [vmem:[%s1] sm:$0xf]
  %v30 = vld [vmem:[%s1 + $0x4] sm:$0xf]
  %v31 = vld [vmem:[%s1 + $0x8] sm:$0xf]
  %v32 = vld [vmem:[%s1 + $0xc] sm:$0xf]
  %v33 = vld [vmem:[%s2] sm:$0x1]
  %v35 = vlaneseq
  %v36 = vshrl.u32 %v35, 7
  %v37 = vsub.s32 0, %v36
  %v38 = vrot.slane %v33, %v37
  %v44 = vunpack.c.l.b16 %v29
  %v45 = vunpack.c.l.b16 %v30
  %v46 = vunpack.c.l.b16 %v31
  %v47 = vunpack.c.l.b16 %v32
  %v48 = vpack.c.b16 %v45, %v44
  %v49 = vpack.c.b16 %v47, %v46
  %vm52 = vcmask 261120
  %v54 = vsel %vm52, %v28, 0
  %56 = vmatprep.subr.bf16.mxu0 0
  %57 = vmatpush1.bf16.msra.mxu0 %v48
  %58 = vmatprep.subr.bf16.mxu0 0
  %59 = vmatpush1.bf16.msra.mxu0 %v49
  %60 = vmatprep.subr.bf16.mxu0 0
  %61 = vmatpush1.bf16.msra.mxu0 0
  %62 = vmatprep.subr.bf16.mxu0 0
  %63 = vmatpush1.bf16.msra.mxu0 0
  %64 = vmatprep.subr.bf16.mxu0 0
  %65 = vmatpush1.bf16.msra.mxu0 0
  %66 = vmatprep.subr.bf16.mxu0 0
  %67 = vmatpush1.bf16.msra.mxu0 0
  %68 = vmatprep.subr.bf16.mxu0 0
  %69 = vmatpush1.bf16.msra.mxu0 0
  %70 = vmatprep.subr.bf16.mxu0 0
  %71 = vmatpush1.bf16.msra.mxu0 0
  %72 = vmatprep.subr.bf16.mxu0 0
  %73 = vmatpush1.bf16.msra.mxu0 0
  %74 = vmatprep.subr.bf16.mxu0 0
  %75 = vmatpush1.bf16.msra.mxu0 0
  %76 = vmatprep.subr.bf16.mxu0 0
  %77 = vmatpush1.bf16.msra.mxu0 0
  %78 = vmatprep.subr.bf16.mxu0 0
  %79 = vmatpush1.bf16.msra.mxu0 0
  %80 = vmatprep.subr.bf16.mxu0 0
  %81 = vmatpush1.bf16.msra.mxu0 0
  %82 = vmatprep.subr.bf16.mxu0 0
  %83 = vmatpush1.bf16.msra.mxu0 0
  %84 = vmatprep.subr.bf16.mxu0 0
  %85 = vmatpush1.bf16.msra.mxu0 0
  %86 = vmatprep.subr.bf16.mxu0 0
  %87 = vmatpush1.bf16.msra.mxu0 0
  %88 = vmatprep.mubr.bf16.mxu0 0
  %89 = vmatmul.mubr.bf16.gmra.mrb[0].mxu0 %v54
  %v90 = vpop.f32.mrb[0].mxu0
  %v91 = vadd.f32 %v38, %v90
  %v92 = vpop.f32.mrb[0].mxu0
  %v93 = vpop.f32.mrb[0].mxu0
  %v94 = vpop.f32.mrb[0].mxu0
  %95 = vdwg.mxu0
  %v96 = vmax.f32 %v91, 0.0
  %v97 = vpack.c.bf16 %v96, %v96
  %v98 = vld [vmem:[%s3] sm:$0xf]
  %v99 = vld [vmem:[%s3 + $0x4] sm:$0xf]
  %v100 = vld [vmem:[%s4] sm:$0x1]
  %v102 = vlaneseq
  %v103 = vshrl.u32 %v102, 7
  %v104 = vsub.s32 0, %v103
  %v105 = vrot.slane %v100, %v104
  %v109 = vunpack.c.l.b16 %v98
  %v110 = vunpack.c.l.b16 %v99
  %v111 = vpack.c.b16 %v110, %v109
  %vm113 = vcmask 130048
  %v115 = vsel %vm113, %v97, 0
  %117 = vmatprep.subr.bf16.mxu0 0
  %118 = vmatpush1.bf16.msra.mxu0 %v111
  %119 = vmatprep.subr.bf16.mxu0 0
  %120 = vmatpush1.bf16.msra.mxu0 0
  %121 = vmatprep.subr.bf16.mxu0 0
  %122 = vmatpush1.bf16.msra.mxu0 0
  %123 = vmatprep.subr.bf16.mxu0 0
  %124 = vmatpush1.bf16.msra.mxu0 0
  %125 = vmatprep.subr.bf16.mxu0 0
  %126 = vmatpush1.bf16.msra.mxu0 0
  %127 = vmatprep.subr.bf16.mxu0 0
  %128 = vmatpush1.bf16.msra.mxu0 0
  %129 = vmatprep.subr.bf16.mxu0 0
  %130 = vmatpush1.bf16.msra.mxu0 0
  %131 = vmatprep.subr.bf16.mxu0 0
  %132 = vmatpush1.bf16.msra.mxu0 0
  %133 = vmatprep.subr.bf16.mxu0 0
  %134 = vmatpush1.bf16.msra.mxu0 0
  %135 = vmatprep.subr.bf16.mxu0 0
  %136 = vmatpush1.bf16.msra.mxu0 0
  %137 = vmatprep.subr.bf16.mxu0 0
  %138 = vmatpush1.bf16.msra.mxu0 0
  %139 = vmatprep.subr.bf16.mxu0 0
  %140 = vmatpush1.bf16.msra.mxu0 0
  %141 = vmatprep.subr.bf16.mxu0 0
  %142 = vmatpush1.bf16.msra.mxu0 0
  %143 = vmatprep.subr.bf16.mxu0 0
  %144 = vmatpush1.bf16.msra.mxu0 0
  %145 = vmatprep.subr.bf16.mxu0 0
  %146 = vmatpush1.bf16.msra.mxu0 0
  %147 = vmatprep.subr.bf16.mxu0 0
  %148 = vmatpush1.bf16.msra.mxu0 0
  %149 = vmatprep.mubr.bf16.mxu0 0
  %150 = vmatmul.mubr.bf16.gmra.mrb[0].mxu0 %v115
  %v151 = vpop.f32.mrb[0].mxu0
  %v152 = vadd.f32 %v105, %v151
  %v153 = vpop.f32.mrb[0].mxu0
  %v154 = vpop.f32.mrb[0].mxu0
  %v155 = vpop.f32.mrb[0].mxu0
  %156 = vdwg.mxu0
  %v157 = vmax.f32 %v152, 0.0
  %v158 = vpack.c.bf16 %v157, %v157
  %v159 = vld [vmem:[%s5] sm:$0xf]
  %v160 = vld [vmem:[%s6] sm:$0x1]
  %v162 = vlaneseq
  %v163 = vshrl.u32 %v162, 7
  %v164 = vsub.s32 0, %v163
  %v165 = vrot.slane %v160, %v164
  %vm167 = vcmask 64512
  %v169 = vsel %vm167, %v158, 0
  %vm171 = vcmask 1043456
  %v173 = vsel %vm171, %v159, 0
  %175 = vmatprep.subr.bf16.mxu0 0
  %176 = vmatpush1.bf16.msra.mxu0 %v173
  %177 = vmatprep.subr.bf16.mxu0 0
  %178 = vmatpush1.bf16.msra.mxu0 0
  %179 = vmatprep.subr.bf16.mxu0 0
  %180 = vmatpush1.bf16.msra.mxu0 0
  %181 = vmatprep.subr.bf16.mxu0 0
  %182 = vmatpush1.bf16.msra.mxu0 0
  %183 = vmatprep.subr.bf16.mxu0 0
  %184 = vmatpush1.bf16.msra.mxu0 0
  %185 = vmatprep.subr.bf16.mxu0 0
  %186 = vmatpush1.bf16.msra.mxu0 0
  %187 = vmatprep.subr.bf16.mxu0 0
  %188 = vmatpush1.bf16.msra.mxu0 0
  %189 = vmatprep.subr.bf16.mxu0 0
  %190 = vmatpush1.bf16.msra.mxu0 0
  %191 = vmatprep.subr.bf16.mxu0 0
  %192 = vmatpush1.bf16.msra.mxu0 0
  %193 = vmatprep.subr.bf16.mxu0 0
  %194 = vmatpush1.bf16.msra.mxu0 0
  %195 = vmatprep.subr.bf16.mxu0 0
  %196 = vmatpush1.bf16.msra.mxu0 0
  %197 = vmatprep.subr.bf16.mxu0 0
  %198 = vmatpush1.bf16.msra.mxu0 0
  %199 = vmatprep.subr.bf16.mxu0 0
  %200 = vmatpush1.bf16.msra.mxu0 0
  %201 = vmatprep.subr.bf16.mxu0 0
  %202 = vmatpush1.bf16.msra.mxu0 0
  %203 = vmatprep.subr.bf16.mxu0 0
  %204 = vmatpush1.bf16.msra.mxu0 0
  %205 = vmatprep.subr.bf16.mxu0 0
  %206 = vmatpush1.bf16.msra.mxu0 0
  %207 = vmatprep.mubr.bf16.mxu0 0
  %208 = vmatmul.mubr.bf16.gmra.mrb[0].mxu0 %v169
  %v209 = vpop.f32.mrb[0].mxu0
  %v210 = vadd.f32 %v165, %v209
  %v211 = vpop.f32.mrb[0].mxu0
  %v212 = vpop.f32.mrb[0].mxu0
  %v213 = vpop.f32.mrb[0].mxu0
  %214 = vdwg.mxu0
  %vm215 = vcmask 31744
  %216 = vst.msk [vmem:[%s7] sm:$0xff] %vm215, %v210
  // Predicated region
  $region30: #{tpu_custom_call.1} parent=0 // pred_check
    _
  $region31: #{tpu_custom_call.1} parent=0 // pred_check_branch
    %218 = sbr.rel (0) target = $region33
  $region32: #{tpu_custom_call.1} parent=0 // pred_region
    _
  $region33: #{tpu_custom_call.1} parent=0 // pred_fallthru
    _
  // Predicated region
  $region34: #{tpu_custom_call.1} parent=0 // pred_check
    _
  $region35: #{tpu_custom_call.1} parent=0 // pred_check_branch
    %220 = sbr.rel (0) target = $region37
  $region36: #{tpu_custom_call.1} parent=0 // pred_region
    _
  $region37: #{tpu_custom_call.1} parent=0 // pred_fallthru
    _

</llo_original>
